<compile_context>
chip_gen: v7x
topology: tpu7x:2x2x1
jax: 0.10.0
libtpu: 0.0.40
codegen_flags: <defaults>
</compile_context>

<pallas_src>
import functools

import jax
import jax.numpy as jnp
import numpy as np
from jax.experimental import pallas as pl
from jax.experimental.pallas import tpu as pltpu

_LANE = 128     # lane width / MXU-friendly alignment
_SUBLANE = 8    # f32 sublane granularity


def _round_up(n, m):
    return ((n + m - 1) // m) * m


def _pad2d(a, rows, cols):
    r, c = a.shape
    return jnp.pad(a, ((0, rows - r), (0, cols - c)))


def _mc_dropout_kernel(x_ref, w1_ref, b1_ref, w2_ref, b2_ref, bits_ref,
                       o_ref, h_ref, *, keep_threshold, inv_keep, apply_dropout):
    # fc1 + bias + ReLU is sample-invariant: compute it once per batch tile
    # (the sample axis is the inner, sequential grid axis) and keep it in VMEM.
    @pl.when(pl.program_id(1) == 0)
    def _():
        h = jnp.dot(x_ref[...], w1_ref[...], preferred_element_type=jnp.float32)
        h_ref[...] = jnp.maximum(h + b1_ref[...], 0.0)

    h = h_ref[...]
    if apply_dropout:
        # Inverted dropout: keep with prob (1 - p), scale kept values by 1/(1-p).
        # One unsigned compare against a precomputed uint32 threshold + one where.
        keep = bits_ref[0] >= jnp.uint32(keep_threshold)
        h = jnp.where(keep, h * jnp.float32(inv_keep), jnp.float32(0.0))

    out = jnp.dot(h, w2_ref[...], preferred_element_type=jnp.float32)
    o_ref[0] = (out + b2_ref[...]).astype(o_ref.dtype)


def mc_dropout_forward(x, w1, b1, w2, b2, key, *, dropout_rate=0.1,
                       training=True, num_samples=1, tile_b=256):
    """Fused MC-dropout MLP forward.

    x: (B, I); w1: (I, H) [pre-transposed vs PyTorch]; b1: (H,);
    w2: (H, O); b2: (O,).  Returns (num_samples, B, O).
    """
    if not (0.0 <= float(dropout_rate) < 1.0):
        raise ValueError("dropout_rate must be in [0, 1)")
    B, I = x.shape
    H = w1.shape[1]
    O = w2.shape[1]
    S = int(num_samples)

    # MXU / lane-friendly padded sizes (zero padding is exact for this MLP).
    Ip = _round_up(I, _LANE)
    Hp = _round_up(H, _LANE)
    Op = _round_up(O, _LANE)
    tb = _round_up(min(int(tile_b), _round_up(B, _SUBLANE)), _SUBLANE)
    Bp = _round_up(B, tb)

    xp = _pad2d(x.astype(jnp.float32), Bp, Ip)
    w1p = _pad2d(w1.astype(jnp.float32), Ip, Hp)
    w2p = _pad2d(w2.astype(jnp.float32), Hp, Op)
    b1p = _pad2d(b1.reshape(1, -1).astype(jnp.float32), 1, Hp)
    b2p = _pad2d(b2.reshape(1, -1).astype(jnp.float32), 1, Op)

    apply_dropout = bool(training) and dropout_rate > 0.0
    # Per-sample random bits generated wrapper-side (portable: no in-kernel PRNG).
    bits = jax.random.bits(key, (S, Bp, Hp), dtype=jnp.uint32)

    keep_threshold = int(round(float(dropout_rate) * float(2 ** 32)))
    inv_keep = 1.0 / (1.0 - float(dropout_rate)) if apply_dropout else 1.0

    kernel = functools.partial(
        _mc_dropout_kernel,
        keep_threshold=keep_threshold,
        inv_keep=inv_keep,
        apply_dropout=apply_dropout,
    )

    out = pl.pallas_call(
        kernel,
        out_shape=jax.ShapeDtypeStruct((S, Bp, Op), jnp.float32),
        grid=(Bp // tb, S),
        in_specs=[
            pl.BlockSpec((tb, Ip), lambda b, s: (b, 0)),        # x: per batch tile
            pl.BlockSpec((Ip, Hp), lambda b, s: (0, 0)),        # w1: resident
            pl.BlockSpec((1, Hp), lambda b, s: (0, 0)),         # b1: resident
            pl.BlockSpec((Hp, Op), lambda b, s: (0, 0)),        # w2: resident
            pl.BlockSpec((1, Op), lambda b, s: (0, 0)),         # b2: resident
            pl.BlockSpec((1, tb, Hp), lambda b, s: (s, b, 0)),  # dropout bits
        ],
        out_specs=pl.BlockSpec((1, tb, Op), lambda b, s: (s, b, 0)),
        scratch_shapes=[pltpu.VMEM((tb, Hp), jnp.float32)],     # relu(x@w1+b1) cache
        compiler_params=pltpu.CompilerParams(
            dimension_semantics=("parallel", "arbitrary")),
    )(xp, w1p, b1p, w2p, b2p, bits)

    return out[:, :B, :O].astype(x.dtype)


def mc_dropout_predict(x, w1, b1, w2, b2, key, *, dropout_rate=0.1, num_samples=100):
    """MC-dropout predictive mean / std (matches MCDropoutNN.predict)."""
    samples = mc_dropout_forward(x, w1, b1, w2, b2, key,
                                 dropout_rate=dropout_rate,
                                 training=True, num_samples=num_samples)
    return samples.mean(axis=0), samples.std(axis=0, ddof=1)


def _init_linear(key, fan_in, fan_out):
    """Deterministic init mimicking nn.Linear: U(-1/sqrt(fan_in), 1/sqrt(fan_in))."""
    kw, kb = jax.random.split(key)
    bound = 1.0 / np.sqrt(fan_in)
    # stored already transposed: (fan_in, fan_out)
    w = jax.random.uniform(kw, (fan_in, fan_out), jnp.float32, -bound, bound)
    b = jax.random.uniform(kb, (fan_out,), jnp.float32, -bound, bound)
    return w, b


if __name__ == "__main__":
    input_size, hidden_size, output_size = 16, 32, 8
    batch = 8
    dropout_rate = 0.1

    root = jax.random.PRNGKey(0)
    k_x, k_fc1, k_fc2, k_drop = jax.random.split(root, 4)

    x = jax.random.normal(k_x, (batch, input_size), jnp.float32)
    w1, b1 = _init_linear(k_fc1, input_size, hidden_size)
    w2, b2 = _init_linear(k_fc2, hidden_size, output_size)

    ref = jnp.maximum(x @ w1 + b1, 0.0) @ w2 + b2

    # 1) Eval mode (dropout off) must equal the plain MLP.
    y_eval = mc_dropout_forward(x, w1, b1, w2, b2, k_drop,
                                dropout_rate=dropout_rate, training=False,
                                num_samples=1)
    jax.block_until_ready(y_eval)
    np.testing.assert_allclose(np.asarray(y_eval[0]), np.asarray(ref),
                               rtol=1e-4, atol=1e-4)

    # 2) Training mode with p=0: every fused MC sample must equal the plain forward.
    y_p0 = mc_dropout_forward(x, w1, b1, w2, b2, k_drop,
                              dropout_rate=0.0, training=True, num_samples=4)
    jax.block_until_ready(y_p0)
    for s in range(4):
        np.testing.assert_allclose(np.asarray(y_p0[s]), np.asarray(ref),
                                   rtol=1e-4, atol=1e-4)

    # 3) MC-dropout predict path (training-mode dropout, many fused samples).
    mean, std = mc_dropout_predict(x, w1, b1, w2, b2, k_drop,
                                   dropout_rate=dropout_rate, num_samples=16)
    jax.block_until_ready((mean, std))
    assert mean.shape == (batch, output_size)
    assert std.shape == (batch, output_size)
    assert bool(jnp.all(jnp.isfinite(mean))) and bool(jnp.all(jnp.isfinite(std)))

    print("KERNEL_OK")
</pallas_src>

<mosaic_0001>
module attributes {stable_mosaic.version = 11 : i64} {
  func.func @_mc_dropout_kernel(%arg0: i32, %arg1: i32, %arg2: memref<8x128xf32, #tpu.memory_space<vmem>>, %arg3: memref<128x128xf32, #tpu.memory_space<vmem>>, %arg4: memref<1x128xf32, #tpu.memory_space<vmem>>, %arg5: memref<128x128xf32, #tpu.memory_space<vmem>>, %arg6: memref<1x128xf32, #tpu.memory_space<vmem>>, %arg7: memref<1x8x128xi32, #tpu.memory_space<vmem>>, %arg8: memref<1x8x128xf32, #tpu.memory_space<vmem>>, %arg9: memref<8x128xf32, #tpu.memory_space<vmem>>) attributes {dimension_semantics = [#tpu.dimension_semantics<parallel>, #tpu.dimension_semantics<arbitrary>], iteration_bounds = array<i64: 1, 1>, scalar_prefetch = 0 : i64, scratch_operands = 1 : i64, tpu.core_type = #tpu.core_type<tc>, window_params = [{transform_indices = @transform_0, window_bounds = array<i64: 8, 128>}, {pipeline_mode = #tpu.pipeline_mode<synchronous>, transform_indices = @transform_1, window_bounds = array<i64: 128, 128>}, {pipeline_mode = #tpu.pipeline_mode<synchronous>, transform_indices = @transform_2, window_bounds = array<i64: 1, 128>}, {pipeline_mode = #tpu.pipeline_mode<synchronous>, transform_indices = @transform_3, window_bounds = array<i64: 128, 128>}, {pipeline_mode = #tpu.pipeline_mode<synchronous>, transform_indices = @transform_4, window_bounds = array<i64: 1, 128>}, {transform_indices = @transform_5, window_bounds = array<i64: 1, 8, 128>}, {transform_indices = @transform_6, window_bounds = array<i64: 1, 8, 128>}]} {
    %c0_i32 = arith.constant 0 : i32
    %0 = arith.cmpi eq, %arg1, %c0_i32 : i32
    %1 = arith.extui %0 : i1 to i32
    %c0_i32_0 = arith.constant 0 : i32
    %2 = arith.cmpi ne, %1, %c0_i32_0 : i32
    scf.if %2 {
      %c0_9 = arith.constant 0 : index
      %c0_10 = arith.constant 0 : index
      %12 = vector.load %arg2[%c0_9, %c0_10] : memref<8x128xf32, #tpu.memory_space<vmem>>, vector<8x128xf32>
      %c0_11 = arith.constant 0 : index
      %c0_12 = arith.constant 0 : index
      %13 = vector.load %arg3[%c0_11, %c0_12] : memref<128x128xf32, #tpu.memory_space<vmem>>, vector<128x128xf32>
      %cst_13 = arith.constant dense<0.000000e+00> : vector<8x128xf32>
      %14 = tpu.matmul %12, %13, %cst_13 {dimension_numbers = #tpu.dot_dimension_numbers<[1], [0], [0], [1], [0, 0, 1, 1], [], []>} : vector<8x128xf32>, vector<128x128xf32>, vector<8x128xf32> -> vector<8x128xf32>
      %c0_14 = arith.constant 0 : index
      %c0_15 = arith.constant 0 : index
      %15 = vector.load %arg4[%c0_14, %c0_15] : memref<1x128xf32, #tpu.memory_space<vmem>>, vector<1x128xf32>
      %16 = vector.broadcast %15 : vector<1x128xf32> to vector<8x128xf32>
      %17 = arith.addf %14, %16 : vector<8x128xf32>
      %cst_16 = arith.constant 0.000000e+00 : f32
      %18 = vector.broadcast %cst_16 : f32 to vector<8x128xf32>
      %19 = arith.maximumf %17, %18 : vector<8x128xf32>
      %c0_17 = arith.constant 0 : index
      %c0_18 = arith.constant 0 : index
      %20 = vector.load %arg9[%c0_17, %c0_18] : memref<8x128xf32, #tpu.memory_space<vmem>>, vector<8x128xf32>
      tpu.vector_store %arg9[%c0_17, %c0_18], %19 {strides = array<i32>} : memref<8x128xf32, #tpu.memory_space<vmem>>, vector<8x128xf32>,
    } else {
    }
    %c0 = arith.constant 0 : index
    %c0_1 = arith.constant 0 : index
    %3 = vector.load %arg9[%c0, %c0_1] : memref<8x128xf32, #tpu.memory_space<vmem>>, vector<8x128xf32>
    %c0_2 = arith.constant 0 : index
    %c0_3 = arith.constant 0 : index
    %4 = vector.load %arg5[%c0_2, %c0_3] : memref<128x128xf32, #tpu.memory_space<vmem>>, vector<128x128xf32>
    %cst = arith.constant dense<0.000000e+00> : vector<8x128xf32>
    %5 = tpu.matmul %3, %4, %cst {dimension_numbers = #tpu.dot_dimension_numbers<[1], [0], [0], [1], [0, 0, 1, 1], [], []>} : vector<8x128xf32>, vector<128x128xf32>, vector<8x128xf32> -> vector<8x128xf32>
    %c0_4 = arith.constant 0 : index
    %c0_5 = arith.constant 0 : index
    %6 = vector.load %arg6[%c0_4, %c0_5] : memref<1x128xf32, #tpu.memory_space<vmem>>, vector<1x128xf32>
    %7 = vector.broadcast %6 : vector<1x128xf32> to vector<8x128xf32>
    %8 = arith.addf %5, %7 : vector<8x128xf32>
    %c0_6 = arith.constant 0 : index
    %c0_7 = arith.constant 0 : index
    %c0_8 = arith.constant 0 : index
    %9 = vector.load %arg8[%c0_6, %c0_7, %c0_8] : memref<1x8x128xf32, #tpu.memory_space<vmem>>, vector<1x8x128xf32>
    %10 = vector.shape_cast %9 : vector<1x8x128xf32> to vector<8x128xf32>
    %11 = vector.shape_cast %8 : vector<8x128xf32> to vector<1x8x128xf32>
    tpu.vector_store %arg8[%c0_6, %c0_7, %c0_8], %11 {strides = array<i32>} : memref<1x8x128xf32, #tpu.memory_space<vmem>>, vector<1x8x128xf32>,
    return
  }
  func.func @transform_0(%arg0: i32, %arg1: i32) -> (i32, i32) {
    %c0_i32 = arith.constant 0 : i32
    %c0_i32_0 = arith.constant 0 : i32
    return %arg0, %c0_i32 : i32, i32
  }
  func.func @transform_1(%arg0: i32, %arg1: i32) -> (i32, i32) {
    %c0_i32 = arith.constant 0 : i32
    %c0_i32_0 = arith.constant 0 : i32
    %c0_i32_1 = arith.constant 0 : i32
    return %c0_i32, %c0_i32_0 : i32, i32
  }
  func.func @transform_2(%arg0: i32, %arg1: i32) -> (i32, i32) {
    %c0_i32 = arith.constant 0 : i32
    %c0_i32_0 = arith.constant 0 : i32
    %c0_i32_1 = arith.constant 0 : i32
    return %c0_i32, %c0_i32_0 : i32, i32
  }
  func.func @transform_3(%arg0: i32, %arg1: i32) -> (i32, i32) {
    %c0_i32 = arith.constant 0 : i32
    %c0_i32_0 = arith.constant 0 : i32
    %c0_i32_1 = arith.constant 0 : i32
    return %c0_i32, %c0_i32_0 : i32, i32
  }
  func.func @transform_4(%arg0: i32, %arg1: i32) -> (i32, i32) {
    %c0_i32 = arith.constant 0 : i32
    %c0_i32_0 = arith.constant 0 : i32
    %c0_i32_1 = arith.constant 0 : i32
    return %c0_i32, %c0_i32_0 : i32, i32
  }
  func.func @transform_5(%arg0: i32, %arg1: i32) -> (i32, i32, i32) {
    %c0_i32 = arith.constant 0 : i32
    %c0_i32_0 = arith.constant 0 : i32
    return %arg1, %arg0, %c0_i32 : i32, i32, i32
  }
  func.func @transform_6(%arg0: i32, %arg1: i32) -> (i32, i32, i32) {
    %c0_i32 = arith.constant 0 : i32
    %c0_i32_0 = arith.constant 0 : i32
    return %arg1, %arg0, %c0_i32 : i32, i32, i32
  }
}

</mosaic_0001>

<llo_original>
// kernel: tpu_custom_call.1
$region0: #{tpu_custom_call.1}
  #allocation0 [shape = 'u32[]', space=smem, size = 0x4, offset = 0x4, fixed_abs, tag = 'smem constant byte address 0x4 - core index']
  #allocation1 [shape = 'u32[144,128]{1,0:T(1,128)}', space=vmem, size = 0x12000, scoped, tag = 'internal scratch']
  #allocation2 [shape = 'f32[8,128]{1,0:T(8,128)}', space=vmem, size = 0x1000, scoped, tag = 'scratch operand']
  %s0 = inlined_call_operand.hbm [shape: f32[8,128], index: 0, kind: input, shape index: {}]
  %s1 = inlined_call_operand.hbm [shape: f32[128,128], index: 1, kind: input, shape index: {}]
  %s2 = inlined_call_operand.vmem [shape: f32[1,128], index: 2, kind: input, shape index: {}]
  %s3 = inlined_call_operand.hbm [shape: f32[128,128], index: 3, kind: input, shape index: {}]
  %s4 = inlined_call_operand.vmem [shape: f32[1,128], index: 4, kind: input, shape index: {}]
  %s5 = inlined_call_operand.vmem [shape: u32[1,8,128], index: 5, kind: input, shape index: {}]
  %s6 = inlined_call_operand.hbm [shape: f32[1,8,128], index: 6, kind: output, shape index: {}]
  %s7 = sld [smem:[#allocation0]]
  $region50: #{tpu_custom_call.1} parent=0
    _
  %s9 = ssub.s32 1, %s7
  %s10 = scalar_select 0, %s9, %s7
  $region1: #{tpu_custom_call.1} parent=0
    #allocation3 [shape = 'u8[4096]{0}', space=vmem, size = 0x1000, scoped, tag = 'input window, operand 0, single buffered']
    #allocation4 [shape = 's32[1]{0}', space=sflag, size = 0x4, scoped, tag = 'scoped memory for tpu_custom_call.1']
    #allocation5 [shape = 's32[1]{0}', space=sflag, size = 0x4, scoped, tag = 'scoped memory for tpu_custom_call.1']
    #allocation6 [shape = 'u8[65536]{0}', space=vmem, size = 0x10000, scoped, tag = 'input window, operand 1, single buffered']
    #allocation7 [shape = 's32[1]{0}', space=sflag, size = 0x4, scoped, tag = 'scoped memory for tpu_custom_call.1']
    #allocation8 [shape = 'u8[65536]{0}', space=vmem, size = 0x10000, scoped, tag = 'input window, operand 3, single buffered']
    #allocation9 [shape = 'u8[4096]{0}', space=vmem, size = 0x1000, scoped, tag = 'output window, operand 0, single buffered']
    %11 = vsyncpa [#allocation4], 0
    %12 = vsyncpa [#allocation7], 0
    %13 = vsyncpa [#allocation5], 0
    // Predicated region
    $region2: #{tpu_custom_call.1} parent=1 // pred_check
      _
    $region3: #{tpu_custom_call.1} parent=1 // pred_check_branch
      %15 = sbr.rel (0) target = $region5
    $region4: #{tpu_custom_call.1} parent=1 // pred_region
      %s17 = ssub.s32 128, 128
      %18 = vsyncadd [#allocation4], %s17
      %s20 = sshll.u32 [#allocation3], 4
      %s21 = int_to_ptr.vmem [resolvable:$true] %s20
      %23 = dma.hbm_to_vmem [thread:$0]  %s0, 128, %s21, [#allocation4]
    $region5: #{tpu_custom_call.1} parent=1 // pred_fallthru
      _
    // Predicated region
    $region6: #{tpu_custom_call.1} parent=1 // pred_check
      _
    $region7: #{tpu_custom_call.1} parent=1 // pred_check_branch
      %25 = sbr.rel (0) target = $region9
    $region8: #{tpu_custom_call.1} parent=1 // pred_region
      %s27 = ssub.s32 2048, 2048
      %28 = vsyncadd [#allocation7], %s27
      %s29 = sshll.u32 [#allocation6], 4
      %s30 = int_to_ptr.vmem [resolvable:$true] %s29
      %35 = dma.hbm_to_vmem [thread:$0]  %s1, 2048, %s30, [#allocation7], 128, 128, 8
    $region9: #{tpu_custom_call.1} parent=1 // pred_fallthru
      _
    // Predicated region
    $region10: #{tpu_custom_call.1} parent=1 // pred_check
      _
    $region11: #{tpu_custom_call.1} parent=1 // pred_check_branch
      %37 = sbr.rel (0) target = $region13
    $region12: #{tpu_custom_call.1} parent=1 // pred_region
      _
    $region13: #{tpu_custom_call.1} parent=1 // pred_fallthru
      _
    // Predicated region
    $region14: #{tpu_custom_call.1} parent=1 // pred_check
      _
    $region15: #{tpu_custom_call.1} parent=1 // pred_check_branch
      %39 = sbr.rel (0) target = $region17
    $region16: #{tpu_custom_call.1} parent=1 // pred_region
      %s41 = ssub.s32 2048, 2048
      %42 = vsyncadd [#allocation7], %s41
      %s43 = sshll.u32 [#allocation8], 4
      %s44 = int_to_ptr.vmem [resolvable:$true] %s43
      %49 = dma.hbm_to_vmem [thread:$0]  %s3, 2048, %s44, [#allocation7], 128, 128, 8
    $region17: #{tpu_custom_call.1} parent=1 // pred_fallthru
      _
    // Predicated region
    $region18: #{tpu_custom_call.1} parent=1 // pred_check
      _
    $region19: #{tpu_custom_call.1} parent=1 // pred_check_branch
      %51 = sbr.rel (0) target = $region21
    $region20: #{tpu_custom_call.1} parent=1 // pred_region
      _
    $region21: #{tpu_custom_call.1} parent=1 // pred_fallthru
      _
    // Predicated region
    $region22: #{tpu_custom_call.1} parent=1 // pred_check
      _
    $region23: #{tpu_custom_call.1} parent=1 // pred_check_branch
      %53 = sbr.rel (0) target = $region25
    $region24: #{tpu_custom_call.1} parent=1 // pred_region
      _
    $region25: #{tpu_custom_call.1} parent=1 // pred_fallthru
      _
    // Predicated region
    $region26: #{tpu_custom_call.1} parent=1 // pred_check
      _
    $region27: #{tpu_custom_call.1} parent=1 // pred_check_branch
      %55 = sbr.rel (0) target = $region29
    $region28: #{tpu_custom_call.1} parent=1 // pred_region
      %56 = dma.done [#allocation4], 128
    $region29: #{tpu_custom_call.1} parent=1 // pred_fallthru
      _
    // Predicated region
    $region30: #{tpu_custom_call.1} parent=1 // pred_check
      _
    $region31: #{tpu_custom_call.1} parent=1 // pred_check_branch
      %58 = sbr.rel (0) target = $region33
    $region32: #{tpu_custom_call.1} parent=1 // pred_region
      %59 = dma.done [#allocation7], 2048
    $region33: #{tpu_custom_call.1} parent=1 // pred_fallthru
      _
    // Predicated region
    $region34: #{tpu_custom_call.1} parent=1 // pred_check
      _
    $region35: #{tpu_custom_call.1} parent=1 // pred_check_branch
      %61 = sbr.rel (0) target = $region37
    $region36: #{tpu_custom_call.1} parent=1 // pred_region
      %62 = dma.done [#allocation7], 2048
    $region37: #{tpu_custom_call.1} parent=1 // pred_fallthru
      _
    %p63 = scmp.eq.s32.totalorder 0, 0
    // Predicated region
    $region38: #{tpu_custom_call.1} parent=1 // pred_check
      %p64 = pneg %p63
    $region39: #{tpu_custom_call.1} parent=1 // pred_check_branch
      %66 = sbr.rel (%p64) target = $region41
    $region40: #{tpu_custom_call.1} parent=1 // pred_region
      %v67 = vld [vmem:[#allocation3] sm:$0xff]
      %v68 = vld [vmem:[#allocation6] sm:$0xff]
      %v69 = vld [vmem:[#allocation6 + $0x8] sm:$0xff]
      %v70 = vld [vmem:[#allocation6 + $0x10] sm:$0xff]
      %v71 = vld [vmem:[#allocation6 + $0x18] sm:$0xff]
      %v72 = vld [vmem:[#allocation6 + $0x20] sm:$0xff]
      %v73 = vld [vmem:[#allocation6 + $0x28] sm:$0xff]
      %v74 = vld [vmem:[#allocation6 + $0x30] sm:$0xff]
      %v75 = vld [vmem:[#allocation6 + $0x38] sm:$0xff]
      %v76 = vld [vmem:[#allocation6 + $0x40] sm:$0xff]
      %v77 = vld [vmem:[#allocation6 + $0x48] sm:$0xff]
      %v78 = vld [vmem:[#allocation6 + $0x50] sm:$0xff]
      %v79 = vld [vmem:[#allocation6 + $0x58] sm:$0xff]
      %v80 = vld [vmem:[#allocation6 + $0x60] sm:$0xff]
      %v81 = vld [vmem:[#allocation6 + $0x68] sm:$0xff]
      %v82 = vld [vmem:[#allocation6 + $0x70] sm:$0xff]
      %v83 = vld [vmem:[#allocation6 + $0x78] sm:$0xff]
      %v84 = vld [vmem:[%s2] sm:$0x1]
      %v86 = vlaneseq
      %v87 = vshrl.u32 %v86, 7
      %v88 = vsub.s32 0, %v87
      %v89 = vrot.slane %v84, %v88
      %91 = vmatprep.subr.mxu0 0.0
      %92 = vmatpush1.msra.mxu0 %v68
      %93 = vmatprep.subr.mxu0 0.0
      %94 = vmatpush1.msra.mxu0 %v69
      %95 = vmatprep.subr.mxu0 0.0
      %96 = vmatpush1.msra.mxu0 %v70
      %97 = vmatprep.subr.mxu0 0.0
      %98 = vmatpush1.msra.mxu0 %v71
      %99 = vmatprep.subr.mxu0 0.0
      %100 = vmatpush1.msra.mxu0 %v72
      %101 = vmatprep.subr.mxu0 0.0
      %102 = vmatpush1.msra.mxu0 %v73
      %103 = vmatprep.subr.mxu0 0.0
      %104 = vmatpush1.msra.mxu0 %v74
      %105 = vmatprep.subr.mxu0 0.0
      %106 = vmatpush1.msra.mxu0 %v75
      %107 = vmatprep.subr.mxu0 0.0
      %108 = vmatpush1.msra.mxu0 %v76
      %109 = vmatprep.subr.mxu0 0.0
      %110 = vmatpush1.msra.mxu0 %v77
      %111 = vmatprep.subr.mxu0 0.0
      %112 = vmatpush1.msra.mxu0 %v78
      %113 = vmatprep.subr.mxu0 0.0
      %114 = vmatpush1.msra.mxu0 %v79
      %115 = vmatprep.subr.mxu0 0.0
      %116 = vmatpush1.msra.mxu0 %v80
      %117 = vmatprep.subr.mxu0 0.0
      %118 = vmatpush1.msra.mxu0 %v81
      %119 = vmatprep.subr.mxu0 0.0
      %120 = vmatpush1.msra.mxu0 %v82
      %121 = vmatprep.subr.mxu0 0.0
      %122 = vmatpush1.msra.mxu0 %v83
      %123 = vmatprep.subr.mxu0 0.0
      %124 = vmatpush1.msra.mxu0 0.0
      %125 = vmatprep.subr.mxu0 0.0
      %126 = vmatpush1.msra.mxu0 0.0
      %127 = vmatprep.subr.mxu0 0.0
      %128 = vmatpush1.msra.mxu0 0.0
      %129 = vmatprep.subr.mxu0 0.0
      %130 = vmatpush1.msra.mxu0 0.0
      %131 = vmatprep.subr.mxu0 0.0
      %132 = vmatpush1.msra.mxu0 0.0
      %133 = vmatprep.subr.mxu0 0.0
      %134 = vmatpush1.msra.mxu0 0.0
      %135 = vmatprep.subr.mxu0 0.0
      %136 = vmatpush1.msra.mxu0 0.0
      %137 = vmatprep.subr.mxu0 0.0
      %138 = vmatpush1.msra.mxu0 0.0
      %139 = vmatprep.subr.mxu0 0.0
      %140 = vmatpush1.msra.mxu0 0.0
      %141 = vmatprep.subr.mxu0 0.0
      %142 = vmatpush1.msra.mxu0 0.0
      %143 = vmatprep.subr.mxu0 0.0
      %144 = vmatpush1.msra.mxu0 0.0
      %145 = vmatprep.subr.mxu0 0.0
      %146 = vmatpush1.msra.mxu0 0.0
      %147 = vmatprep.subr.mxu0 0.0
      %148 = vmatpush1.msra.mxu0 0.0
      %149 = vmatprep.subr.mxu0 0.0
      %150 = vmatpush1.msra.mxu0 0.0
      %151 = vmatprep.subr.mxu0 0.0
      %152 = vmatpush1.msra.mxu0 0.0
      %153 = vmatprep.subr.mxu0 0.0
      %154 = vmatpush1.msra.mxu0 0.0
      %155 = vmatprep.mubr.f32.mxu0 0.0
      %156 = vmatmul.mubr.f32.gmra.mrb[0].mxu0 %v67
      %v157 = vpop.f32.mrb[0].mxu0
      %v158 = vadd.f32 %v89, %v157
      %v159 = vpop.f32.mrb[0].mxu0
      %160 = vdwg.mxu0
      %v161 = vmax.f32 %v158, 0.0
      %162 = vst [vmem:[#allocation2] sm:$0xff] %v161
    $region41: #{tpu_custom_call.1} parent=1 // pred_fallthru
      _
    %v163 = vld [vmem:[#allocation2] sm:$0xff]
    %v164 = vld [vmem:[#allocation8] sm:$0xff]
    %v165 = vld [vmem:[#allocation8 + $0x8] sm:$0xff]
    %v166 = vld [vmem:[#allocation8 + $0x10] sm:$0xff]
    %v167 = vld [vmem:[#allocation8 + $0x18] sm:$0xff]
    %v168 = vld [vmem:[#allocation8 + $0x20] sm:$0xff]
    %v169 = vld [vmem:[#allocation8 + $0x28] sm:$0xff]
    %v170 = vld [vmem:[#allocation8 + $0x30] sm:$0xff]
    %v171 = vld [vmem:[#allocation8 + $0x38] sm:$0xff]
    %v172 = vld [vmem:[#allocation8 + $0x40] sm:$0xff]
    %v173 = vld [vmem:[#allocation8 + $0x48] sm:$0xff]
    %v174 = vld [vmem:[#allocation8 + $0x50] sm:$0xff]
    %v175 = vld [vmem:[#allocation8 + $0x58] sm:$0xff]
    %v176 = vld [vmem:[#allocation8 + $0x60] sm:$0xff]
    %v177 = vld [vmem:[#allocation8 + $0x68] sm:$0xff]
    %v178 = vld [vmem:[#allocation8 + $0x70] sm:$0xff]
    %v179 = vld [vmem:[#allocation8 + $0x78] sm:$0xff]
    %v180 = vld [vmem:[%s4] sm:$0x1]
    %v182 = vlaneseq
    %v183 = vshrl.u32 %v182, 7
    %v184 = vsub.s32 0, %v183
    %v185 = vrot.slane %v180, %v184
    %187 = vmatprep.subr.mxu0 0.0
    %188 = vmatpush1.msra.mxu0 %v164
    %189 = vmatprep.subr.mxu0 0.0
    %190 = vmatpush1.msra.mxu0 %v165
    %191 = vmatprep.subr.mxu0 0.0
    %192 = vmatpush1.msra.mxu0 %v166
    %193 = vmatprep.subr.mxu0 0.0
    %194 = vmatpush1.msra.mxu0 %v167
    %195 = vmatprep.subr.mxu0 0.0
    %196 = vmatpush1.msra.mxu0 %v168
    %197 = vmatprep.subr.mxu0 0.0
    %198 = vmatpush1.msra.mxu0 %v169
    %199 = vmatprep.subr.mxu0 0.0
    %200 = vmatpush1.msra.mxu0 %v170
    %201 = vmatprep.subr.mxu0 0.0
    %202 = vmatpush1.msra.mxu0 %v171
    %203 = vmatprep.subr.mxu0 0.0
    %204 = vmatpush1.msra.mxu0 %v172
    %205 = vmatprep.subr.mxu0 0.0
    %206 = vmatpush1.msra.mxu0 %v173
    %207 = vmatprep.subr.mxu0 0.0
    %208 = vmatpush1.msra.mxu0 %v174
    %209 = vmatprep.subr.mxu0 0.0
    %210 = vmatpush1.msra.mxu0 %v175
    %211 = vmatprep.subr.mxu0 0.0
    %212 = vmatpush1.msra.mxu0 %v176
    %213 = vmatprep.subr.mxu0 0.0
    %214 = vmatpush1.msra.mxu0 %v177
    %215 = vmatprep.subr.mxu0 0.0
    %216 = vmatpush1.msra.mxu0 %v178
    %217 = vmatprep.subr.mxu0 0.0
    %218 = vmatpush1.msra.mxu0 %v179
    %219 = vmatprep.subr.mxu0 0.0
    %220 = vmatpush1.msra.mxu0 0.0
    %221 = vmatprep.subr.mxu0 0.0
    %222 = vmatpush1.msra.mxu0 0.0
    %223 = vmatprep.subr.mxu0 0.0
    %224 = vmatpush1.msra.mxu0 0.0
    %225 = vmatprep.subr.mxu0 0.0
    %226 = vmatpush1.msra.mxu0 0.0
    %227 = vmatprep.subr.mxu0 0.0
    %228 = vmatpush1.msra.mxu0 0.0
    %229 = vmatprep.subr.mxu0 0.0
    %230 = vmatpush1.msra.mxu0 0.0
    %231 = vmatprep.subr.mxu0 0.0
    %232 = vmatpush1.msra.mxu0 0.0
    %233 = vmatprep.subr.mxu0 0.0
    %234 = vmatpush1.msra.mxu0 0.0
    %235 = vmatprep.subr.mxu0 0.0
    %236 = vmatpush1.msra.mxu0 0.0
    %237 = vmatprep.subr.mxu0 0.0
    %238 = vmatpush1.msra.mxu0 0.0
    %239 = vmatprep.subr.mxu0 0.0
    %240 = vmatpush1.msra.mxu0 0.0
    %241 = vmatprep.subr.mxu0 0.0
    %242 = vmatpush1.msra.mxu0 0.0
    %243 = vmatprep.subr.mxu0 0.0
    %244 = vmatpush1.msra.mxu0 0.0
    %245 = vmatprep.subr.mxu0 0.0
    %246 = vmatpush1.msra.mxu0 0.0
    %247 = vmatprep.subr.mxu0 0.0
    %248 = vmatpush1.msra.mxu0 0.0
    %249 = vmatprep.subr.mxu0 0.0
    %250 = vmatpush1.msra.mxu0 0.0
    %251 = vmatprep.mubr.f32.mxu0 0.0
    %252 = vmatmul.mubr.f32.gmra.mrb[0].mxu0 %v163
    %v253 = vpop.f32.mrb[0].mxu0
    %v254 = vadd.f32 %v185, %v253
    %v255 = vpop.f32.mrb[0].mxu0
    %256 = vdwg.mxu0
    %257 = vst [vmem:[#allocation9] sm:$0xff] %v254
    // Predicated region
    $region42: #{tpu_custom_call.1} parent=1 // pred_check
      _
    $region43: #{tpu_custom_call.1} parent=1 // pred_check_branch
      %259 = sbr.rel (0) target = $region45
    $region44: #{tpu_custom_call.1} parent=1 // pred_region
      %s261 = ssub.s32 128, 128
      %262 = vsyncadd [#allocation5], %s261
      %s264 = sshll.u32 [#allocation9], 4
      %s265 = int_to_ptr.vmem [resolvable:$true] %s264
      %267 = dma.vmem_to_hbm [thread:$0]  %s265, 128, %s6, [#allocation5]
    $region45: #{tpu_custom_call.1} parent=1 // pred_fallthru
      _
    // Predicated region
    $region46: #{tpu_custom_call.1} parent=1 // pred_check
      _
    $region47: #{tpu_custom_call.1} parent=1 // pred_check_branch
      %269 = sbr.rel (0) target = $region49
    $region48: #{tpu_custom_call.1} parent=1 // pred_region
      %270 = dma.done [#allocation5], 128
    $region49: #{tpu_custom_call.1} parent=1 // pred_fallthru
      _
    %271 = vsyncpa [#allocation4], 1
    %272 = vsyncpa [#allocation7], 1
    %273 = vsyncpa [#allocation5], 1

</llo_original>
